<compile_context>
chip_gen: v6e
topology: v6e:2x2x1
jax: 0.10.0
libtpu: 0.0.40
codegen_flags: <defaults>
</compile_context>

<pallas_src>
import math

import jax
import jax.numpy as jnp
from jax.experimental import pallas as pl
from jax.experimental.pallas import tpu as pltpu

_LANE_CANDIDATES = (1024, 512, 256, 128)   # lane-dense last-dim widths
_TARGET_TILE_BYTES = 4 * 1024 * 1024       # ~4 MiB per tile


def _scale_kernel(scale_ref, x_ref, o_ref):
    # scale_ref: (1, 1) scalar in SMEM; x_ref / o_ref: (tm, W) tile in VMEM.
    o_ref[...] = x_ref[...] * scale_ref[0, 0]


def _choose_lane_width(total: int) -> tuple[int, int]:
    """Returns (lane_width, pad) picking the widest divisor to avoid padding."""
    for w in _LANE_CANDIDATES:
        if total % w == 0:
            return w, 0
    w = 128
    return w, (-total) % w


def _choose_tile_rows(rows: int, lane_w: int, itemsize: int) -> int:
    tm = max(16, _TARGET_TILE_BYTES // (lane_w * itemsize))
    tm = (tm // 16) * 16          # sublane-safe for f32 and packed bf16/int8
    if rows <= tm:
        return rows               # full-extent block: always layout-legal
    return tm


def _scale_layer_impl(x: jax.Array, scale) -> jax.Array:
    orig_shape = x.shape
    dtype = x.dtype
    total = math.prod(orig_shape) if orig_shape else 1

    scale2d = jnp.asarray(scale, dtype=dtype).reshape(1, 1)

    if total == 0:
        # Degenerate empty tensor: nothing to launch.
        return (x * scale2d[0, 0]).reshape(orig_shape)

    lane_w, pad = _choose_lane_width(total)

    # Flatten (metadata-only for a contiguous buffer); pad only if no lane
    # width divides the element count.
    flat = x.reshape(-1)
    if pad:
        flat = jnp.pad(flat, (0, pad))
    rows = flat.shape[0] // lane_w
    x2d = flat.reshape(rows, lane_w)

    tm = _choose_tile_rows(rows, lane_w, jnp.dtype(dtype).itemsize)
    grid = (pl.cdiv(rows, tm),)

    out2d = pl.pallas_call(
        _scale_kernel,
        out_shape=jax.ShapeDtypeStruct((rows, lane_w), dtype),
        grid=grid,
        in_specs=[
            pl.BlockSpec(memory_space=pltpu.MemorySpace.SMEM),   # scalar scale
            pl.BlockSpec((tm, lane_w), lambda i: (i, 0)),        # input tile
        ],
        out_specs=pl.BlockSpec((tm, lane_w), lambda i: (i, 0)),
        compiler_params=pltpu.CompilerParams(
            dimension_semantics=("parallel",),
            vmem_limit_bytes=32 * 1024 * 1024,
        ),
    )(scale2d, x2d)

    out_flat = out2d.reshape(-1)
    if pad:
        out_flat = out_flat[:total]
    return out_flat.reshape(orig_shape)


# jit so the (rare) pad / unpad ops fuse with surrounding XLA work.
scale_layer = jax.jit(_scale_layer_impl)


if __name__ == "__main__":
    key = jax.random.PRNGKey(0)
    # NCHW input consistent with a conv-style module.
    x = jax.random.normal(key, (2, 4, 16, 16), dtype=jnp.float32)

    # Deterministic parameter init, matching ScaleLayer.__init__: scale = 0.0
    scale = jnp.float32(0.0)
    out = jax.block_until_ready(scale_layer(x, scale))
    assert out.shape == x.shape and out.dtype == x.dtype
    assert bool(jnp.allclose(out, x * scale))

    # Nonzero scale (exercises the math path).
    scale_nz = jnp.float32(1.5)
    out_nz = jax.block_until_ready(scale_layer(x, scale_nz))
    assert bool(jnp.allclose(out_nz, x * scale_nz))

    # Odd total-size input exercises the pad/unpad fallback.
    x_odd = jax.random.normal(jax.random.PRNGKey(1), (3, 5, 7), dtype=jnp.float32)
    out_odd = jax.block_until_ready(scale_layer(x_odd, scale_nz))
    assert out_odd.shape == x_odd.shape
    assert bool(jnp.allclose(out_odd, x_odd * scale_nz))

    # Larger multi-tile input (exercises the tiled/grid path).
    x_big = jax.random.normal(jax.random.PRNGKey(2), (8, 64, 32, 32), dtype=jnp.float32)
    out_big = jax.block_until_ready(scale_layer(x_big, scale_nz))
    assert bool(jnp.allclose(out_big, x_big * scale_nz))

    print("KERNEL_OK")
</pallas_src>

<mosaic_0001>
module attributes {stable_mosaic.version = 11 : i64} {
  func.func @_scale_kernel(%arg0: i32, %arg1: memref<1x1xf32, #tpu.memory_space<smem>>, %arg2: memref<2x1024xf32, #tpu.memory_space<vmem>>, %arg3: memref<2x1024xf32, #tpu.memory_space<vmem>>) attributes {dimension_semantics = [#tpu.dimension_semantics<parallel>], iteration_bounds = array<i64: 1>, scalar_prefetch = 0 : i64, scratch_operands = 0 : i64, tpu.core_type = #tpu.core_type<tc>, window_params = [{transform_indices = @transform_0, window_bounds = array<i64: 1, 1>}, {transform_indices = @transform_1, window_bounds = array<i64: 2, 1024>}, {transform_indices = @transform_2, window_bounds = array<i64: 2, 1024>}]} {
    %c0 = arith.constant 0 : index
    %c0_0 = arith.constant 0 : index
    %0 = vector.load %arg2[%c0, %c0_0] : memref<2x1024xf32, #tpu.memory_space<vmem>>, vector<2x1024xf32>
    %c0_1 = arith.constant 0 : index
    %c0_2 = arith.constant 0 : index
    %1 = memref.load %arg1[%c0_1, %c0_2] : memref<1x1xf32, #tpu.memory_space<smem>>
    %2 = vector.broadcast %1 : f32 to vector<2x1024xf32>
    %3 = arith.mulf %0, %2 : vector<2x1024xf32>
    %c0_3 = arith.constant 0 : index
    %c0_4 = arith.constant 0 : index
    %4 = vector.load %arg3[%c0_3, %c0_4] : memref<2x1024xf32, #tpu.memory_space<vmem>>, vector<2x1024xf32>
    tpu.vector_store %arg3[%c0_3, %c0_4], %3 {strides = array<i32>} : memref<2x1024xf32, #tpu.memory_space<vmem>>, vector<2x1024xf32>,
    return
  }
  func.func @transform_0(%arg0: i32) -> (i32, i32) {
    %c0_i32 = arith.constant 0 : i32
    %c0_i32_0 = arith.constant 0 : i32
    %c0_i32_1 = arith.constant 0 : i32
    return %c0_i32, %c0_i32_0 : i32, i32
  }
  func.func @transform_1(%arg0: i32) -> (i32, i32) {
    %c0_i32 = arith.constant 0 : i32
    %c0_i32_0 = arith.constant 0 : i32
    return %arg0, %c0_i32 : i32, i32
  }
  func.func @transform_2(%arg0: i32) -> (i32, i32) {
    %c0_i32 = arith.constant 0 : i32
    %c0_i32_0 = arith.constant 0 : i32
    return %arg0, %c0_i32 : i32, i32
  }
}

</mosaic_0001>

<llo_original>
// kernel: _scale_layer_impl.1
$region0: #{_scale_layer_impl.1}
  #allocation0 [shape = 'u32[]', space=smem, size = 0x4, offset = 0x4, fixed_abs, tag = 'smem constant byte address 0x4 - core index']
  #allocation1 [shape = 'u32[144,128]{1,0:T(1,128)}', space=vmem, size = 0x12000, scoped, tag = 'internal scratch']
  #allocation2 [shape = 'f32[1,1]{1,0:T(1,128)S(6)}', space=smem, size = 0x200, scoped, tag = 'scoped memory for _scale_layer_impl.1']
  %s0 = inlined_call_operand.<no memory space> [shape: f32[1,1], index: 0, kind: input, shape index: {}]
  %s1 = inlined_call_operand.vmem [shape: f32[2,1024], index: 1, kind: input, shape index: {}]
  %s2 = inlined_call_operand.vmem [shape: f32[2,1024], index: 2, kind: output, shape index: {}]
  %s3 = sld [smem:[#allocation0]]
  $region18: #{_scale_layer_impl.1} parent=0
    _
  %s5 = ssub.s32 1, %s3
  %s6 = scalar_select 0, %s5, %s3
  %7 = sst [smem:[#allocation2]] %s0
  // Predicated region
  $region2: #{_scale_layer_impl.1} parent=0 // pred_check
    _
  $region3: #{_scale_layer_impl.1} parent=0 // pred_check_branch
    %9 = sbr.rel (0) target = $region5
  $region4: #{_scale_layer_impl.1} parent=0 // pred_region
    _
  $region5: #{_scale_layer_impl.1} parent=0 // pred_fallthru
    _
  // Predicated region
  $region6: #{_scale_layer_impl.1} parent=0 // pred_check
    _
  $region7: #{_scale_layer_impl.1} parent=0 // pred_check_branch
    %11 = sbr.rel (0) target = $region9
  $region8: #{_scale_layer_impl.1} parent=0 // pred_region
    _
  $region9: #{_scale_layer_impl.1} parent=0 // pred_fallthru
    _
  %v12 = vld [vmem:[%s1] sm:$0xff]
  %v13 = vld [vmem:[%s1 + $0x8] sm:$0xff]
  %s14 = sld [smem:[#allocation2]]
  %v15 = vstv %s14
  %v16 = vmul.f32 %v12, %v15
  %v17 = vmul.f32 %v13, %v15
  %18 = vst [vmem:[%s2] sm:$0xff] %v16
  %19 = vst [vmem:[%s2 + $0x8] sm:$0xff] %v17
  // Predicated region
  $region10: #{_scale_layer_impl.1} parent=0 // pred_check
    _
  $region11: #{_scale_layer_impl.1} parent=0 // pred_check_branch
    %21 = sbr.rel (0) target = $region13
  $region12: #{_scale_layer_impl.1} parent=0 // pred_region
    _
  $region13: #{_scale_layer_impl.1} parent=0 // pred_fallthru
    _
  // Predicated region
  $region14: #{_scale_layer_impl.1} parent=0 // pred_check
    _
  $region15: #{_scale_layer_impl.1} parent=0 // pred_check_branch
    %23 = sbr.rel (0) target = $region17
  $region16: #{_scale_layer_impl.1} parent=0 // pred_region
    _
  $region17: #{_scale_layer_impl.1} parent=0 // pred_fallthru
    _

</llo_original>
